<compile_context>
chip_gen: v7x
topology: tpu7x:2x2x1
jax: 0.10.0
libtpu: 0.0.40
codegen_flags: <defaults>
</compile_context>

<pallas_src>
import jax
import jax.numpy as jnp
from jax.experimental import pallas as pl
from jax.experimental.pallas import tpu as pltpu


def _ca_kernel(x_ref, w1t_ref, b1_ref, w2t_ref, b2_ref, o_ref):
    # x_ref block: (Bb, C, L); w1t: (C, Cr); b1: (1, Cr); w2t: (Cr, C); b2: (1, C)
    x = x_ref[...]                                                  # (Bb, C, L)

    # AdaptiveAvgPool1d(1): mean over length, accumulated in f32 (tiny path).
    means = jnp.mean(x, axis=-1, dtype=jnp.float32)                 # (Bb, C)

    # Conv1d(C -> C//r, k=1) + ReLU, batched over the block.
    h = jnp.dot(means, w1t_ref[...],
                preferred_element_type=jnp.float32) + b1_ref[...]   # (Bb, Cr)
    h = jnp.maximum(h, 0.0)

    # Conv1d(C//r -> C, k=1) + Sigmoid, batched over the block.
    y = jnp.dot(h, w2t_ref[...],
                preferred_element_type=jnp.float32) + b2_ref[...]   # (Bb, C)
    y = jax.nn.sigmoid(y)

    # Scale the input (broadcast over L). Keep the big tile in its own dtype;
    # cast the tiny scale instead of upcasting the whole tile.
    o_ref[...] = (x * y.astype(x.dtype)[:, :, None]).astype(o_ref.dtype)


def ca_layer_1d(x, w1, b1, w2, b2, *, block_batch=None):
    """x: (B, C, L); w1: (Cr, C); b1: (Cr,); w2: (C, Cr); b2: (C,)."""
    B, C, L = x.shape
    Cr = w1.shape[0]
    itemsize = jnp.dtype(x.dtype).itemsize

    if block_batch is None:
        # Target ~1 MiB per x tile so DMAs are large enough to approach the
        # HBM roofline (double-buffered in+out tiles stay ~4 MiB, well under
        # the scoped-VMEM defaults on v5e/v6e/v7x).
        block_batch = max(1, (1 << 20) // (C * L * itemsize))
    Bb = min(B, block_batch)
    grid_b = pl.cdiv(B, Bb)
    B_pad = grid_b * Bb

    # Pad the batch so every block is full; padded rows are zeros -> output
    # rows are zeros -> sliced off below (keeps the kernel mask-free).
    x_p = x if B_pad == B else jnp.pad(x, ((0, B_pad - B), (0, 0), (0, 0)))

    # Pre-transpose the 1x1-conv weights so the in-kernel SE path is
    # (Bb, C) @ (C, Cr) and (Bb, Cr) @ (Cr, C); biases lane-major row vectors.
    w1t = jnp.asarray(w1).T            # (C, Cr)
    w2t = jnp.asarray(w2).T            # (Cr, C)
    b1r = jnp.asarray(b1).reshape(1, Cr)
    b2r = jnp.asarray(b2).reshape(1, C)

    cost = pl.CostEstimate(
        flops=2 * B_pad * C * L + 4 * B_pad * C * Cr,
        transcendentals=B_pad * C,
        bytes_accessed=2 * B_pad * C * L * itemsize
        + (2 * C * Cr + C + Cr) * 4,
    )

    out = pl.pallas_call(
        _ca_kernel,
        out_shape=jax.ShapeDtypeStruct((B_pad, C, L), x.dtype),
        grid_spec=pltpu.PrefetchScalarGridSpec(
            num_scalar_prefetch=0,
            grid=(grid_b,),
            in_specs=[
                pl.BlockSpec((Bb, C, L), lambda b: (b, 0, 0)),   # x tile (Bb batches)
                pl.BlockSpec((C, Cr), lambda b: (0, 0)),         # W1^T (full, VMEM-resident)
                pl.BlockSpec((1, Cr), lambda b: (0, 0)),         # b1 row
                pl.BlockSpec((Cr, C), lambda b: (0, 0)),         # W2^T (full)
                pl.BlockSpec((1, C), lambda b: (0, 0)),          # b2 row
            ],
            out_specs=pl.BlockSpec((Bb, C, L), lambda b: (b, 0, 0)),
        ),
        compiler_params=pltpu.CompilerParams(
            dimension_semantics=("parallel",)),   # v7x: batch blocks across both TCs
        cost_estimate=cost,
    )(x_p, w1t, b1r, w2t, b2r)

    return out[:B] if B_pad != B else out


def ca_layer_1d_ref(x, w1, b1, w2, b2):
    """Pure-JAX reference matching the PyTorch forward."""
    mean = jnp.mean(x.astype(jnp.float32), axis=-1, keepdims=True)        # (B, C, 1)
    h = jnp.einsum('rc,bcl->brl', w1, mean) + b1[None, :, None]           # (B, Cr, 1)
    h = jnp.maximum(h, 0.0)
    y = jnp.einsum('cr,brl->bcl', w2, h) + b2[None, :, None]              # (B, C, 1)
    y = jax.nn.sigmoid(y)
    return (y * x).astype(x.dtype)


if __name__ == "__main__":
    B, C, L = 6, 32, 128
    reduction = 8
    Cr = C // reduction

    key = jax.random.PRNGKey(0)
    kx, k1, k2, k3, k4 = jax.random.split(key, 5)

    x = jax.random.normal(kx, (B, C, L), dtype=jnp.float32)
    # Deterministic synthetic parameters (Conv1d weights with kernel size 1,
    # squeezed to 2-D matrices).
    w1 = jax.random.normal(k1, (Cr, C), dtype=jnp.float32) * 0.1
    b1 = jax.random.normal(k2, (Cr,), dtype=jnp.float32) * 0.1
    w2 = jax.random.normal(k3, (C, Cr), dtype=jnp.float32) * 0.1
    b2 = jax.random.normal(k4, (C,), dtype=jnp.float32) * 0.1

    # block_batch=4 exercises the multi-block grid + batch-padding path
    # (grid=2, pad 6 -> 8). In production the default (~1 MiB tiles) is used.
    out = ca_layer_1d(x, w1, b1, w2, b2, block_batch=4)
    out = jax.block_until_ready(out)

    ref = ca_layer_1d_ref(x, w1, b1, w2, b2)
    assert out.shape == (B, C, L)
    assert jnp.allclose(out, ref, atol=1e-5, rtol=1e-5)

    # Also check the default (single-block) tiling path.
    out2 = jax.block_until_ready(ca_layer_1d(x, w1, b1, w2, b2))
    assert jnp.allclose(out2, ref, atol=1e-5, rtol=1e-5)

    print("KERNEL_OK")
</pallas_src>

<mosaic_0001>
module attributes {stable_mosaic.version = 11 : i64} {
  func.func @_ca_kernel(%arg0: i32, %arg1: memref<4x32x128xf32, #tpu.memory_space<vmem>>, %arg2: memref<32x4xf32, #tpu.memory_space<vmem>>, %arg3: memref<1x4xf32, #tpu.memory_space<vmem>>, %arg4: memref<4x32xf32, #tpu.memory_space<vmem>>, %arg5: memref<1x32xf32, #tpu.memory_space<vmem>>, %arg6: memref<4x32x128xf32, #tpu.memory_space<vmem>>) attributes {dimension_semantics = [#tpu.dimension_semantics<parallel>], iteration_bounds = array<i64: 2>, scalar_prefetch = 0 : i64, scratch_operands = 0 : i64, tpu.core_type = #tpu.core_type<tc>, window_params = [{transform_indices = @transform_0, window_bounds = array<i64: 4, 32, 128>}, {pipeline_mode = #tpu.pipeline_mode<synchronous>, transform_indices = @transform_1, window_bounds = array<i64: 32, 4>}, {pipeline_mode = #tpu.pipeline_mode<synchronous>, transform_indices = @transform_2, window_bounds = array<i64: 1, 4>}, {pipeline_mode = #tpu.pipeline_mode<synchronous>, transform_indices = @transform_3, window_bounds = array<i64: 4, 32>}, {pipeline_mode = #tpu.pipeline_mode<synchronous>, transform_indices = @transform_4, window_bounds = array<i64: 1, 32>}, {transform_indices = @transform_5, window_bounds = array<i64: 4, 32, 128>}]} {
    %c0 = arith.constant 0 : index
    %c0_0 = arith.constant 0 : index
    %c0_1 = arith.constant 0 : index
    %0 = vector.load %arg1[%c0, %c0_0, %c0_1] : memref<4x32x128xf32, #tpu.memory_space<vmem>>, vector<4x32x128xf32>
    %cst = arith.constant dense<0.000000e+00> : vector<4x32xf32>
    %1 = vector.multi_reduction <add>, %0, %cst [2] : vector<4x32x128xf32> to vector<4x32xf32>
    %cst_2 = arith.constant 1.280000e+02 : f32
    %2 = vector.broadcast %cst_2 : f32 to vector<4x32xf32>
    %3 = arith.divf %1, %2 : vector<4x32xf32>
    %c0_3 = arith.constant 0 : index
    %c0_4 = arith.constant 0 : index
    %4 = vector.load %arg2[%c0_3, %c0_4] : memref<32x4xf32, #tpu.memory_space<vmem>>, vector<32x4xf32>
    %cst_5 = arith.constant dense<0.000000e+00> : vector<4x4xf32>
    %5 = tpu.matmul %3, %4, %cst_5 {dimension_numbers = #tpu.dot_dimension_numbers<[1], [0], [0], [1], [0, 0, 1, 1], [], []>} : vector<4x32xf32>, vector<32x4xf32>, vector<4x4xf32> -> vector<4x4xf32>
    %c0_6 = arith.constant 0 : index
    %c0_7 = arith.constant 0 : index
    %6 = vector.load %arg3[%c0_6, %c0_7] : memref<1x4xf32, #tpu.memory_space<vmem>>, vector<1x4xf32>
    %7 = vector.broadcast %6 : vector<1x4xf32> to vector<4x4xf32>
    %8 = arith.addf %5, %7 : vector<4x4xf32>
    %cst_8 = arith.constant 0.000000e+00 : f32
    %9 = vector.broadcast %cst_8 : f32 to vector<4x4xf32>
    %10 = arith.maximumf %8, %9 : vector<4x4xf32>
    %c0_9 = arith.constant 0 : index
    %c0_10 = arith.constant 0 : index
    %11 = vector.load %arg4[%c0_9, %c0_10] : memref<4x32xf32, #tpu.memory_space<vmem>>, vector<4x32xf32>
    %cst_11 = arith.constant dense<0.000000e+00> : vector<4x32xf32>
    %12 = tpu.matmul %10, %11, %cst_11 {dimension_numbers = #tpu.dot_dimension_numbers<[1], [0], [0], [1], [0, 0, 1, 1], [], []>} : vector<4x4xf32>, vector<4x32xf32>, vector<4x32xf32> -> vector<4x32xf32>
    %c0_12 = arith.constant 0 : index
    %c0_13 = arith.constant 0 : index
    %13 = vector.load %arg5[%c0_12, %c0_13] : memref<1x32xf32, #tpu.memory_space<vmem>>, vector<1x32xf32>
    %14 = vector.broadcast %13 : vector<1x32xf32> to vector<4x32xf32>
    %15 = arith.addf %12, %14 : vector<4x32xf32>
    %16 = arith.negf %15 : vector<4x32xf32>
    %17 = math.exp %16 : vector<4x32xf32>
    %cst_14 = arith.constant 1.000000e+00 : f32
    %18 = vector.broadcast %cst_14 : f32 to vector<4x32xf32>
    %19 = arith.addf %18, %17 : vector<4x32xf32>
    %20 = arith.divf %18, %19 : vector<4x32xf32>
    %21 = vector.shape_cast %20 : vector<4x32xf32> to vector<4x32x1xf32>
    %22 = vector.broadcast %21 : vector<4x32x1xf32> to vector<4x32x128xf32>
    %23 = arith.mulf %0, %22 : vector<4x32x128xf32>
    %c0_15 = arith.constant 0 : index
    %c0_16 = arith.constant 0 : index
    %c0_17 = arith.constant 0 : index
    %24 = vector.load %arg6[%c0_15, %c0_16, %c0_17] : memref<4x32x128xf32, #tpu.memory_space<vmem>>, vector<4x32x128xf32>
    tpu.vector_store %arg6[%c0_15, %c0_16, %c0_17], %23 {strides = array<i32>} : memref<4x32x128xf32, #tpu.memory_space<vmem>>, vector<4x32x128xf32>,
    return
  }
  func.func @transform_0(%arg0: i32) -> (i32, i32, i32) {
    %c0_i32 = arith.constant 0 : i32
    %c0_i32_0 = arith.constant 0 : i32
    %c0_i32_1 = arith.constant 0 : i32
    return %arg0, %c0_i32, %c0_i32_0 : i32, i32, i32
  }
  func.func @transform_1(%arg0: i32) -> (i32, i32) {
    %c0_i32 = arith.constant 0 : i32
    %c0_i32_0 = arith.constant 0 : i32
    %c0_i32_1 = arith.constant 0 : i32
    return %c0_i32, %c0_i32_0 : i32, i32
  }
  func.func @transform_2(%arg0: i32) -> (i32, i32) {
    %c0_i32 = arith.constant 0 : i32
    %c0_i32_0 = arith.constant 0 : i32
    %c0_i32_1 = arith.constant 0 : i32
    return %c0_i32, %c0_i32_0 : i32, i32
  }
  func.func @transform_3(%arg0: i32) -> (i32, i32) {
    %c0_i32 = arith.constant 0 : i32
    %c0_i32_0 = arith.constant 0 : i32
    %c0_i32_1 = arith.constant 0 : i32
    return %c0_i32, %c0_i32_0 : i32, i32
  }
  func.func @transform_4(%arg0: i32) -> (i32, i32) {
    %c0_i32 = arith.constant 0 : i32
    %c0_i32_0 = arith.constant 0 : i32
    %c0_i32_1 = arith.constant 0 : i32
    return %c0_i32, %c0_i32_0 : i32, i32
  }
  func.func @transform_5(%arg0: i32) -> (i32, i32, i32) {
    %c0_i32 = arith.constant 0 : i32
    %c0_i32_0 = arith.constant 0 : i32
    %c0_i32_1 = arith.constant 0 : i32
    return %arg0, %c0_i32, %c0_i32_0 : i32, i32, i32
  }
}

</mosaic_0001>

<llo_original>
// kernel: tpu_custom_call.1
$region0: #{tpu_custom_call.1}
  #allocation0 [shape = 'u32[]', space=smem, size = 0x4, offset = 0x4, fixed_abs, tag = 'smem constant byte address 0x4 - core index']
  #allocation1 [shape = 'u32[144,128]{1,0:T(1,128)}', space=vmem, size = 0x12000, scoped, tag = 'internal scratch']
  %s0 = inlined_call_operand.hbm [shape: f32[8,32,128], index: 0, kind: input, shape index: {}]
  %s1 = inlined_call_operand.vmem [shape: f32[32,4], index: 1, kind: input, shape index: {}]
  %s2 = inlined_call_operand.vmem [shape: f32[1,4], index: 2, kind: input, shape index: {}]
  %s3 = inlined_call_operand.vmem [shape: f32[4,32], index: 3, kind: input, shape index: {}]
  %s4 = inlined_call_operand.vmem [shape: f32[1,32], index: 4, kind: input, shape index: {}]
  %s5 = inlined_call_operand.hbm [shape: f32[8,32,128], index: 5, kind: output, shape index: {}]
  %s6 = sld [smem:[#allocation0]]
  $region57: #{tpu_custom_call.1} parent=0
    _
  %s8 = ssub.s32 1, %s6
  %s9 = scalar_select 0, %s8, %s6
  $region1: #{tpu_custom_call.1} parent=0
    #allocation2 [shape = 'u8[131072]{0}', space=vmem, size = 0x20000, scoped, tag = 'input window, operand 0']
    #allocation3 [shape = 's32[2]{0}', space=sflag, size = 0x8, scoped, tag = 'scoped memory for tpu_custom_call.1']
    #allocation4 [shape = 's32[2]{0}', space=sflag, size = 0x8, scoped, tag = 'scoped memory for tpu_custom_call.1']
    #allocation5 [shape = 'u8[131072]{0}', space=vmem, size = 0x20000, scoped, tag = 'output window, operand 0']
    %10 = vsyncpa [#allocation3], 0
    %s11 = scalar_lea.sflag [#allocation3], 1
    %12 = vsyncpa %s11, 0
    %13 = vsyncpa [#allocation4], 0
    %s14 = scalar_lea.sflag [#allocation4], 1
    %15 = vsyncpa %s14, 0
    loop: start=0, step=1, limit=4
    $region2: #{tpu_custom_call.1} parent=1 // loop_pre_header
      _
    $region3: #{tpu_custom_call.1} parent=1 // loop_header
      %s17 = sphi 0, %s21
      %p18 = scmp.ge.s32.totalorder %s17, 4
      %s27 = sphi 0, %s29
      %s30 = sphi 0, %s27
      %s31 = sphi 0, %s30
      %s47 = sphi 0, %s31
      %s51 = sphi 0, %s51
      %s53 = sphi 0, %s51
      %s54 = sphi 0, %s53
      %s68 = sphi 0, %s54
      %s72 = sphi 0, %s72
      %s74 = sphi 0, %s72
      %s75 = sphi 0, %s74
      %s89 = sphi 0, %s75
      %s93 = sphi 0, %s93
      %s95 = sphi 0, %s93
      %s96 = sphi 0, %s95
      %s110 = sphi 0, %s96
      %s114 = sphi 0, %s114
      %s116 = sphi 0, %s114
      %s117 = sphi 0, %s116
      %s131 = sphi 0, %s117
      %s137 = sphi 0, %s139
      %s140 = sphi 0, %s137
      %s141 = sphi 0, %s140
      %s157 = sphi 0, %s141
    $region4: #{tpu_custom_call.1} parent=1 // loop_header_branch
      %20 = sbr.rel (%p18) target = $region8
    $region5: #{tpu_custom_call.1} parent=1 // loop_body
      %s22 = ssub.s32 %s17, 1
      %s23 = ssub.s32 %s17, 2
      %s24 = sadd.s32 %s17, 1
      %s25 = ssub.s32 %s17, %s24
      %p26 = scmp.eq.s32.totalorder %s25, 0
      %s28 = sadd.s32 %s27, 1
      %s29 = scalar_select %p26, %s27, %s28
      %p32 = pneg %p26
      %p33 = scmp.eq.s32.totalorder %s17, 1
      %p34 = por %p32, %p33
      %p35 = scmp.ne.s32.totalorder %s27, %s30
      %p36 = scmp.eq.s32.totalorder %s17, 0
      %p37 = por %p35, %p36
      %p38 = scmp.ne.s32.totalorder %s27, %s30
      %p39 = scmp.eq.s32.totalorder %s22, 1
      %p40 = por %p38, %p39
      %p41 = scmp.ne.s32.totalorder %s30, %s31
      %p42 = scmp.eq.s32.totalorder %s22, 0
      %p43 = por %p41, %p42
      %p44 = scmp.ne.s32.totalorder %s30, %s31
      %p45 = scmp.eq.s32.totalorder %s23, 1
      %p46 = por %p44, %p45
      %p48 = scmp.ne.s32.totalorder %s31, %s47
      %p49 = scmp.eq.s32.totalorder %s23, 0
      %p50 = por %p48, %p49
      %s52 = sadd.s32 %s51, 1
      %p55 = scmp.eq.s32.totalorder %s17, 1
      %p56 = scmp.ne.s32.totalorder %s51, %s53
      %p57 = scmp.eq.s32.totalorder %s17, 0
      %p58 = por %p56, %p57
      %p59 = scmp.ne.s32.totalorder %s51, %s53
      %p60 = scmp.eq.s32.totalorder %s22, 1
      %p61 = por %p59, %p60
      %p62 = scmp.ne.s32.totalorder %s53, %s54
      %p63 = scmp.eq.s32.totalorder %s22, 0
      %p64 = por %p62, %p63
      %p65 = scmp.ne.s32.totalorder %s53, %s54
      %p66 = scmp.eq.s32.totalorder %s23, 1
      %p67 = por %p65, %p66
      %p69 = scmp.ne.s32.totalorder %s54, %s68
      %p70 = scmp.eq.s32.totalorder %s23, 0
      %p71 = por %p69, %p70
      %s73 = sadd.s32 %s72, 1
      %p76 = scmp.eq.s32.totalorder %s17, 1
      %p77 = scmp.ne.s32.totalorder %s72, %s74
      %p78 = scmp.eq.s32.totalorder %s17, 0
      %p79 = por %p77, %p78
      %p80 = scmp.ne.s32.totalorder %s72, %s74
      %p81 = scmp.eq.s32.totalorder %s22, 1
      %p82 = por %p80, %p81
      %p83 = scmp.ne.s32.totalorder %s74, %s75
      %p84 = scmp.eq.s32.totalorder %s22, 0
      %p85 = por %p83, %p84
      %p86 = scmp.ne.s32.totalorder %s74, %s75
      %p87 = scmp.eq.s32.totalorder %s23, 1
      %p88 = por %p86, %p87
      %p90 = scmp.ne.s32.totalorder %s75, %s89
      %p91 = scmp.eq.s32.totalorder %s23, 0
      %p92 = por %p90, %p91
      %s94 = sadd.s32 %s93, 1
      %p97 = scmp.eq.s32.totalorder %s17, 1
      %p98 = scmp.ne.s32.totalorder %s93, %s95
      %p99 = scmp.eq.s32.totalorder %s17, 0
      %p100 = por %p98, %p99
      %p101 = scmp.ne.s32.totalorder %s93, %s95
      %p102 = scmp.eq.s32.totalorder %s22, 1
      %p103 = por %p101, %p102
      %p104 = scmp.ne.s32.totalorder %s95, %s96
      %p105 = scmp.eq.s32.totalorder %s22, 0
      %p106 = por %p104, %p105
      %p107 = scmp.ne.s32.totalorder %s95, %s96
      %p108 = scmp.eq.s32.totalorder %s23, 1
      %p109 = por %p107, %p108
      %p111 = scmp.ne.s32.totalorder %s96, %s110
      %p112 = scmp.eq.s32.totalorder %s23, 0
      %p113 = por %p111, %p112
      %s115 = sadd.s32 %s114, 1
      %p118 = scmp.eq.s32.totalorder %s17, 1
      %p119 = scmp.ne.s32.totalorder %s114, %s116
      %p120 = scmp.eq.s32.totalorder %s17, 0
      %p121 = por %p119, %p120
      %p122 = scmp.ne.s32.totalorder %s114, %s116
      %p123 = scmp.eq.s32.totalorder %s22, 1
      %p124 = por %p122, %p123
      %p125 = scmp.ne.s32.totalorder %s116, %s117
      %p126 = scmp.eq.s32.totalorder %s22, 0
      %p127 = por %p125, %p126
      %p128 = scmp.ne.s32.totalorder %s116, %s117
      %p129 = scmp.eq.s32.totalorder %s23, 1
      %p130 = por %p128, %p129
      %p132 = scmp.ne.s32.totalorder %s117, %s131
      %p133 = scmp.eq.s32.totalorder %s23, 0
      %p134 = por %p132, %p133
      %s135 = ssub.s32 %s17, %s24
      %p136 = scmp.eq.s32.totalorder %s135, 0
      %s138 = sadd.s32 %s137, 1
      %s139 = scalar_select %p136, %s137, %s138
      %p142 = pneg %p136
      %p143 = scmp.eq.s32.totalorder %s17, 1
      %p144 = por %p142, %p143
      %p145 = scmp.ne.s32.totalorder %s137, %s140
      %p146 = scmp.eq.s32.totalorder %s17, 0
      %p147 = por %p145, %p146
      %p148 = scmp.ne.s32.totalorder %s137, %s140
      %p149 = scmp.eq.s32.totalorder %s22, 1
      %p150 = por %p148, %p149
      %p151 = scmp.ne.s32.totalorder %s140, %s141
      %p152 = scmp.eq.s32.totalorder %s22, 0
      %p153 = por %p151, %p152
      %p154 = scmp.ne.s32.totalorder %s140, %s141
      %p155 = scmp.eq.s32.totalorder %s23, 1
      %p156 = por %p154, %p155
      %p158 = scmp.ne.s32.totalorder %s141, %s157
      %p159 = scmp.eq.s32.totalorder %s23, 0
      %p160 = por %p158, %p159
      %p161 = scmp.le.s32.totalorder 1, %s17
      %p162 = scmp.lt.s32.totalorder %s17, 3
      %p163 = pnand %p161, %p162
      %p164 = pneg %p163
      // Predicated region
      $region9: #{tpu_custom_call.1} parent=5 // pred_check
        _
      $region10: #{tpu_custom_call.1} parent=5 // pred_check_branch
        %166 = sbr.rel (%p163) target = $region12
      $region11: #{tpu_custom_call.1} parent=5 // pred_region
        %s167 = ssub.s32 %s17, 1
        // Predicated region
        $region13: #{tpu_custom_call.1} parent=11 // pred_check
          %p168 = pneg %p64
        $region14: #{tpu_custom_call.1} parent=11 // pred_check_branch
          %170 = sbr.rel (%p168) target = $region16
        $region15: #{tpu_custom_call.1} parent=11 // pred_region
          _
        $region16: #{tpu_custom_call.1} parent=11 // pred_fallthru
          _
        // Predicated region
        $region17: #{tpu_custom_call.1} parent=11 // pred_check
          %p171 = pneg %p85
        $region18: #{tpu_custom_call.1} parent=11 // pred_check_branch
          %173 = sbr.rel (%p171) target = $region20
        $region19: #{tpu_custom_call.1} parent=11 // pred_region
          _
        $region20: #{tpu_custom_call.1} parent=11 // pred_fallthru
          _
        // Predicated region
        $region21: #{tpu_custom_call.1} parent=11 // pred_check
          %p174 = pneg %p106
        $region22: #{tpu_custom_call.1} parent=11 // pred_check_branch
          %176 = sbr.rel (%p174) target = $region24
        $region23: #{tpu_custom_call.1} parent=11 // pred_region
          _
        $region24: #{tpu_custom_call.1} parent=11 // pred_fallthru
          _
        // Predicated region
        $region25: #{tpu_custom_call.1} parent=11 // pred_check
          %p177 = pneg %p127
        $region26: #{tpu_custom_call.1} parent=11 // pred_check_branch
          %179 = sbr.rel (%p177) target = $region28
        $region27: #{tpu_custom_call.1} parent=11 // pred_region
          _
        $region28: #{tpu_custom_call.1} parent=11 // pred_fallthru
          _
      $region12: #{tpu_custom_call.1} parent=5 // pred_fallthru
        _
      %p180 = scmp.lt.s32.totalorder %s17, 2
      // Predicated region
      $region29: #{tpu_custom_call.1} parent=5 // pred_check
        %p181 = pneg %p180
      $region30: #{tpu_custom_call.1} parent=5 // pred_check_branch
        %183 = sbr.rel (%p181) target = $region32
      $region31: #{tpu_custom_call.1} parent=5 // pred_region
        // Predicated region
        $region33: #{tpu_custom_call.1} parent=31 // pred_check
          %p184 = pneg %p37
        $region34: #{tpu_custom_call.1} parent=31 // pred_check_branch
          %186 = sbr.rel (%p184) target = $region36
        $region35: #{tpu_custom_call.1} parent=31 // pred_region
          %s187 = sand.u32 %s27, 1
          %s188 = scalar_lea.sflag [#allocation3], %s187
          %s189 = sand.u32 %s27, 1
          %s190 = smul.addr %s189, 128
          %s191 = scalar_lea.vmem [#allocation2], %s190
          %s192 = smul.u32 4, %s17
          %s194 = ssub.s32 2048, 2048
          %195 = vsyncadd %s188, %s194
          %s196 = smul.addr %s192, 4
          %s197 = smul.addr %s196, 128
          %s198 = scalar_lea.hbm %s0, %s197
          %s199 = sshll.u32 %s191, 4
          %s200 = int_to_ptr.vmem [resolvable:$true] %s199
          %205 = dma.hbm_to_vmem [thread:$0]  %s198, 2048, %s200, %s188, 128, 128, 8
        $region36: #{tpu_custom_call.1} parent=31 // pred_fallthru
          _
      $region32: #{tpu_custom_call.1} parent=5 // pred_fallthru
        _
      %p206 = scmp.le.s32.totalorder 1, %s17
      %p207 = scmp.lt.s32.totalorder %s17, 3
      %p208 = pnand %p206, %p207
      %p209 = pneg %p208
      // Predicated region
      $region37: #{tpu_custom_call.1} parent=5 // pred_check
        _
      $region38: #{tpu_custom_call.1} parent=5 // pred_check_branch
        %211 = sbr.rel (%p208) target = $region40
      $region39: #{tpu_custom_call.1} parent=5 // pred_region
        %s212 = ssub.s32 %s17, 1
        %s213 = sand.u32 %s30, 1
        %s214 = scalar_lea.sflag [#allocation3], %s213
        %s215 = sand.u32 %s30, 1
        %s216 = smul.addr %s215, 128
        %s217 = scalar_lea.vmem [#allocation2], %s216
        // Predicated region
        $region41: #{tpu_custom_call.1} parent=39 // pred_check
          %p218 = pneg %p43
        $region42: #{tpu_custom_call.1} parent=39 // pred_check_branch
          %220 = sbr.rel (%p218) target = $region44
        $region43: #{tpu_custom_call.1} parent=39 // pred_region
          %221 = dma.done %s214, 2048
        $region44: #{tpu_custom_call.1} parent=39 // pred_fallthru
          _
        %s222 = sand.u32 %s30, 1
        %s223 = scalar_lea.sflag [#allocation3], %s222
        %s224 = sand.u32 %s30, 1
        %s225 = smul.addr %s224, 128
        %s226 = scalar_lea.vmem [#allocation2], %s225
        %p227 = pneg %p43
        %p228 = pneg %p40
        %p229 = pneg %p64
        %p230 = pneg %p61
        %p231 = pneg %p85
        %p232 = pneg %p82
        %p233 = pneg %p106
        %p234 = pneg %p103
        %p235 = pneg %p127
        %p236 = pneg %p124
        %p237 = pneg %p153
        %p238 = pneg %p150
        %s239 = sand.u32 %s140, 1
        %s240 = scalar_lea.sflag [#allocation4], %s239
        %s241 = sand.u32 %s140, 1
        %s242 = smul.addr %s241, 128
        %s243 = scalar_lea.vmem [#allocation5], %s242
        %s244 = smul.u32 4, %s22
        %s245 = smul.u32 4, %s22
        %v246 = vld [vmem:[%s217] sm:$0xff]
        %v247 = vld [vmem:[%s217 + $0x8] sm:$0xff]
        %v248 = vld [vmem:[%s217 + $0x10] sm:$0xff]
        %v249 = vld [vmem:[%s217 + $0x18] sm:$0xff]
        %v250 = vld [vmem:[%s217 + $0x20] sm:$0xff]
        %v251 = vld [vmem:[%s217 + $0x28] sm:$0xff]
        %v252 = vld [vmem:[%s217 + $0x30] sm:$0xff]
        %v253 = vld [vmem:[%s217 + $0x38] sm:$0xff]
        %v254 = vld [vmem:[%s217 + $0x40] sm:$0xff]
        %v255 = vld [vmem:[%s217 + $0x48] sm:$0xff]
        %v256 = vld [vmem:[%s217 + $0x50] sm:$0xff]
        %v257 = vld [vmem:[%s217 + $0x58] sm:$0xff]
        %v258 = vld [vmem:[%s217 + $0x60] sm:$0xff]
        %v259 = vld [vmem:[%s217 + $0x68] sm:$0xff]
        %v260 = vld [vmem:[%s217 + $0x70] sm:$0xff]
        %v261 = vld [vmem:[%s217 + $0x78] sm:$0xff]
        %262 = vadd.xlane.f32.xlu0 %v246
        %v263 = vpop.xlane.xlu0 %262
        %264 = vadd.xlane.f32.xlu0 %v247
        %v265 = vpop.xlane.xlu0 %264
        %266 = vadd.xlane.f32.xlu0 %v248
        %v267 = vpop.xlane.xlu0 %266
        %268 = vadd.xlane.f32.xlu0 %v249
        %v269 = vpop.xlane.xlu0 %268
        %270 = vadd.xlane.f32.xlu0 %v250
        %v271 = vpop.xlane.xlu0 %270
        %272 = vadd.xlane.f32.xlu0 %v251
        %v273 = vpop.xlane.xlu0 %272
        %274 = vadd.xlane.f32.xlu0 %v252
        %v275 = vpop.xlane.xlu0 %274
        %276 = vadd.xlane.f32.xlu0 %v253
        %v277 = vpop.xlane.xlu0 %276
        %278 = vadd.xlane.f32.xlu0 %v254
        %v279 = vpop.xlane.xlu0 %278
        %280 = vadd.xlane.f32.xlu0 %v255
        %v281 = vpop.xlane.xlu0 %280
        %282 = vadd.xlane.f32.xlu0 %v256
        %v283 = vpop.xlane.xlu0 %282
        %284 = vadd.xlane.f32.xlu0 %v257
        %v285 = vpop.xlane.xlu0 %284
        %286 = vadd.xlane.f32.xlu0 %v258
        %v287 = vpop.xlane.xlu0 %286
        %288 = vadd.xlane.f32.xlu0 %v259
        %v289 = vpop.xlane.xlu0 %288
        %290 = vadd.xlane.f32.xlu0 %v260
        %v291 = vpop.xlane.xlu0 %290
        %292 = vadd.xlane.f32.xlu0 %v261
        %v293 = vpop.xlane.xlu0 %292
        %v294 = vrcp.pop 128.0
        %v295 = vmul.f32 %v263, %v294
        %v296 = vmul.f32 %v265, %v294
        %v297 = vmul.f32 %v267, %v294
        %v298 = vmul.f32 %v269, %v294
        %v299 = vmul.f32 %v271, %v294
        %v300 = vmul.f32 %v273, %v294
        %v301 = vmul.f32 %v275, %v294
        %v302 = vmul.f32 %v277, %v294
        %v303 = vmul.f32 %v279, %v294
        %v304 = vmul.f32 %v281, %v294
        %v305 = vmul.f32 %v283, %v294
        %v306 = vmul.f32 %v285, %v294
        %v307 = vmul.f32 %v287, %v294
        %v308 = vmul.f32 %v289, %v294
        %v309 = vmul.f32 %v291, %v294
        %v310 = vmul.f32 %v293, %v294
        %v311 = vld [vmem:[%s1] sm:$0xff]
        %v312 = vld [vmem:[%s1 + $0x8] sm:$0xff]
        %v313 = vld [vmem:[%s1 + $0x10] sm:$0xff]
        %v314 = vld [vmem:[%s1 + $0x18] sm:$0xff]
        %v315 = vld [vmem:[%s2] sm:$0x1]
        %v317 = vlaneseq
        %v318 = vshrl.u32 %v317, 7
        %v319 = vsub.s32 0, %v318
        %v320 = vrot.slane %v315, %v319
        %v338 = vlaneseq
        %v339 = vand.u32 %v338, 127
        %v340 = vlaneseq
        %v341 = vshrl.u32 %v340, 7
        %v342 = vsub.s32 %v339, %v341
        %v343 = vrot.slane %v295, %v342
        %v344 = vadd.s32 %v339, 4294967288
        %v345 = vlaneseq
        %v346 = vshrl.u32 %v345, 7
        %v347 = vsub.s32 %v344, %v346
        %v348 = vrot.slane %v296, %v347
        %vm349 = vcmask 130112
        %v350 = vsel %vm349, %v348, %v343
        %v351 = vadd.s32 %v339, 4294967280
        %v352 = vlaneseq
        %v353 = vshrl.u32 %v352, 7
        %v354 = vsub.s32 %v351, %v353
        %v355 = vrot.slane %v297, %v354
        %vm356 = vcmask 195712
        %v357 = vsel %vm356, %v355, %v350
        %v358 = vadd.s32 %v339, 4294967272
        %v359 = vlaneseq
        %v360 = vshrl.u32 %v359, 7
        %v361 = vsub.s32 %v358, %v360
        %v362 = vrot.slane %v298, %v361
        %vm363 = vcmask 261312
        %v364 = vsel %vm363, %v362, %v357
        %v365 = vlaneseq
        %v366 = vshrl.u32 %v365, 7
        %v367 = vsub.s32 %v339, %v366
        %v368 = vrot.slane %v299, %v367
        %v369 = vlaneseq
        %v370 = vshrl.u32 %v369, 7
        %v371 = vsub.s32 %v344, %v370
        %v372 = vrot.slane %v300, %v371
        %v373 = vsel %vm349, %v372, %v368
        %v374 = vlaneseq
        %v375 = vshrl.u32 %v374, 7
        %v376 = vsub.s32 %v351, %v375
        %v377 = vrot.slane %v301, %v376
        %v378 = vsel %vm356, %v377, %v373
        %v379 = vlaneseq
        %v380 = vshrl.u32 %v379, 7
        %v381 = vsub.s32 %v358, %v380
        %v382 = vrot.slane %v302, %v381
        %v383 = vsel %vm363, %v382, %v378
        %v384 = vlaneseq
        %v385 = vshrl.u32 %v384, 7
        %v386 = vsub.s32 %v339, %v385
        %v387 = vrot.slane %v303, %v386
        %v388 = vlaneseq
        %v389 = vshrl.u32 %v388, 7
        %v390 = vsub.s32 %v344, %v389
        %v391 = vrot.slane %v304, %v390
        %v392 = vsel %vm349, %v391, %v387
        %v393 = vlaneseq
        %v394 = vshrl.u32 %v393, 7
        %v395 = vsub.s32 %v351, %v394
        %v396 = vrot.slane %v305, %v395
        %v397 = vsel %vm356, %v396, %v392
        %v398 = vlaneseq
        %v399 = vshrl.u32 %v398, 7
        %v400 = vsub.s32 %v358, %v399
        %v401 = vrot.slane %v306, %v400
        %v402 = vsel %vm363, %v401, %v397
        %v403 = vlaneseq
        %v404 = vshrl.u32 %v403, 7
        %v405 = vsub.s32 %v339, %v404
        %v406 = vrot.slane %v307, %v405
        %v407 = vlaneseq
        %v408 = vshrl.u32 %v407, 7
        %v409 = vsub.s32 %v344, %v408
        %v410 = vrot.slane %v308, %v409
        %v411 = vsel %vm349, %v410, %v406
        %v412 = vlaneseq
        %v413 = vshrl.u32 %v412, 7
        %v414 = vsub.s32 %v351, %v413
        %v415 = vrot.slane %v309, %v414
        %v416 = vsel %vm356, %v415, %v411
        %v417 = vlaneseq
        %v418 = vshrl.u32 %v417, 7
        %v419 = vsub.s32 %v358, %v418
        %v420 = vrot.slane %v310, %v419
        %v421 = vsel %vm363, %v420, %v416
        %vm422 = vcmask 1041409
        %v423 = vsel %vm422, %v383, %v364
        %vm424 = vcmask 1042434
        %v425 = vsel %vm424, %v402, %v423
        %vm426 = vcmask 1043459
        %v427 = vsel %vm426, %v421, %v425
        %vm428 = vcmask 261120
        %v429 = vsel %vm428, %v427, 0
        %431 = vmatprep.subr.mxu0 0.0
        %432 = vmatpush1.msra.mxu0 %v311
        %433 = vmatprep.subr.mxu0 0.0
        %434 = vmatpush1.msra.mxu0 %v312
        %435 = vmatprep.subr.mxu0 0.0
        %436 = vmatpush1.msra.mxu0 %v313
        %437 = vmatprep.subr.mxu0 0.0
        %438 = vmatpush1.msra.mxu0 %v314
        %439 = vmatprep.subr.mxu0 0.0
        %440 = vmatpush1.msra.mxu0 0.0
        %441 = vmatprep.subr.mxu0 0.0
        %442 = vmatpush1.msra.mxu0 0.0
        %443 = vmatprep.subr.mxu0 0.0
        %444 = vmatpush1.msra.mxu0 0.0
        %445 = vmatprep.subr.mxu0 0.0
        %446 = vmatpush1.msra.mxu0 0.0
        %447 = vmatprep.subr.mxu0 0.0
        %448 = vmatpush1.msra.mxu0 0.0
        %449 = vmatprep.subr.mxu0 0.0
        %450 = vmatpush1.msra.mxu0 0.0
        %451 = vmatprep.subr.mxu0 0.0
        %452 = vmatpush1.msra.mxu0 0.0
        %453 = vmatprep.subr.mxu0 0.0
        %454 = vmatpush1.msra.mxu0 0.0
        %455 = vmatprep.subr.mxu0 0.0
        %456 = vmatpush1.msra.mxu0 0.0
        %457 = vmatprep.subr.mxu0 0.0
        %458 = vmatpush1.msra.mxu0 0.0
        %459 = vmatprep.subr.mxu0 0.0
        %460 = vmatpush1.msra.mxu0 0.0
        %461 = vmatprep.subr.mxu0 0.0
        %462 = vmatpush1.msra.mxu0 0.0
        %463 = vmatprep.subr.mxu0 0.0
        %464 = vmatpush1.msra.mxu0 0.0
        %465 = vmatprep.subr.mxu0 0.0
        %466 = vmatpush1.msra.mxu0 0.0
        %467 = vmatprep.subr.mxu0 0.0
        %468 = vmatpush1.msra.mxu0 0.0
        %469 = vmatprep.subr.mxu0 0.0
        %470 = vmatpush1.msra.mxu0 0.0
        %471 = vmatprep.subr.mxu0 0.0
        %472 = vmatpush1.msra.mxu0 0.0
        %473 = vmatprep.subr.mxu0 0.0
        %474 = vmatpush1.msra.mxu0 0.0
        %475 = vmatprep.subr.mxu0 0.0
        %476 = vmatpush1.msra.mxu0 0.0
        %477 = vmatprep.subr.mxu0 0.0
        %478 = vmatpush1.msra.mxu0 0.0
        %479 = vmatprep.subr.mxu0 0.0
        %480 = vmatpush1.msra.mxu0 0.0
        %481 = vmatprep.subr.mxu0 0.0
        %482 = vmatpush1.msra.mxu0 0.0
        %483 = vmatprep.subr.mxu0 0.0
        %484 = vmatpush1.msra.mxu0 0.0
        %485 = vmatprep.subr.mxu0 0.0
        %486 = vmatpush1.msra.mxu0 0.0
        %487 = vmatprep.subr.mxu0 0.0
        %488 = vmatpush1.msra.mxu0 0.0
        %489 = vmatprep.subr.mxu0 0.0
        %490 = vmatpush1.msra.mxu0 0.0
        %491 = vmatprep.subr.mxu0 0.0
        %492 = vmatpush1.msra.mxu0 0.0
        %493 = vmatprep.subr.mxu0 0.0
        %494 = vmatpush1.msra.mxu0 0.0
        %495 = vmatprep.mubr.f32.mxu0 0.0
        %496 = vmatmul.mubr.f32.gmra.mrb[0].mxu0 %v429
        %v497 = vpop.f32.mrb[0].mxu0
        %v498 = vadd.f32 %v320, %v497
        %v499 = vpop.f32.mrb[0].mxu0
        %500 = vdwg.mxu0
        %v501 = vmax.f32 %v498, 0.0
        %v502 = vld [vmem:[%s3] sm:$0xf]
        %v503 = vld [vmem:[%s4] sm:$0x1]
        %v505 = vlaneseq
        %v506 = vshrl.u32 %v505, 7
        %v507 = vsub.s32 0, %v506
        %v508 = vrot.slane %v503, %v507
        %vm510 = vcmask 31744
        %v512 = vsel %vm510, %v501, 0
        %vm514 = vcmask 1043456
        %v516 = vsel %vm514, %v502, 0
        %518 = vmatprep.subr.mxu0 0.0
        %519 = vmatpush1.msra.mxu0 %v516
        %520 = vmatprep.subr.mxu0 0.0
        %521 = vmatpush1.msra.mxu0 0.0
        %522 = vmatprep.subr.mxu0 0.0
        %523 = vmatpush1.msra.mxu0 0.0
        %524 = vmatprep.subr.mxu0 0.0
        %525 = vmatpush1.msra.mxu0 0.0
        %526 = vmatprep.subr.mxu0 0.0
        %527 = vmatpush1.msra.mxu0 0.0
        %528 = vmatprep.subr.mxu0 0.0
        %529 = vmatpush1.msra.mxu0 0.0
        %530 = vmatprep.subr.mxu0 0.0
        %531 = vmatpush1.msra.mxu0 0.0
        %532 = vmatprep.subr.mxu0 0.0
        %533 = vmatpush1.msra.mxu0 0.0
        %534 = vmatprep.subr.mxu0 0.0
        %535 = vmatpush1.msra.mxu0 0.0
        %536 = vmatprep.subr.mxu0 0.0
        %537 = vmatpush1.msra.mxu0 0.0
        %538 = vmatprep.subr.mxu0 0.0
        %539 = vmatpush1.msra.mxu0 0.0
        %540 = vmatprep.subr.mxu0 0.0
        %541 = vmatpush1.msra.mxu0 0.0
        %542 = vmatprep.subr.mxu0 0.0
        %543 = vmatpush1.msra.mxu0 0.0
        %544 = vmatprep.subr.mxu0 0.0
        %545 = vmatpush1.msra.mxu0 0.0
        %546 = vmatprep.subr.mxu0 0.0
        %547 = vmatpush1.msra.mxu0 0.0
        %548 = vmatprep.subr.mxu0 0.0
        %549 = vmatpush1.msra.mxu0 0.0
        %550 = vmatprep.subr.mxu0 0.0
        %551 = vmatpush1.msra.mxu0 0.0
        %552 = vmatprep.subr.mxu0 0.0
        %553 = vmatpush1.msra.mxu0 0.0
        %554 = vmatprep.subr.mxu0 0.0
        %555 = vmatpush1.msra.mxu0 0.0
        %556 = vmatprep.subr.mxu0 0.0
        %557 = vmatpush1.msra.mxu0 0.0
        %558 = vmatprep.subr.mxu0 0.0
        %559 = vmatpush1.msra.mxu0 0.0
        %560 = vmatprep.subr.mxu0 0.0
        %561 = vmatpush1.msra.mxu0 0.0
        %562 = vmatprep.subr.mxu0 0.0
        %563 = vmatpush1.msra.mxu0 0.0
        %564 = vmatprep.subr.mxu0 0.0
        %565 = vmatpush1.msra.mxu0 0.0
        %566 = vmatprep.subr.mxu0 0.0
        %567 = vmatpush1.msra.mxu0 0.0
        %568 = vmatprep.subr.mxu0 0.0
        %569 = vmatpush1.msra.mxu0 0.0
        %570 = vmatprep.subr.mxu0 0.0
        %571 = vmatpush1.msra.mxu0 0.0
        %572 = vmatprep.subr.mxu0 0.0
        %573 = vmatpush1.msra.mxu0 0.0
        %574 = vmatprep.subr.mxu0 0.0
        %575 = vmatpush1.msra.mxu0 0.0
        %576 = vmatprep.subr.mxu0 0.0
        %577 = vmatpush1.msra.mxu0 0.0
        %578 = vmatprep.subr.mxu0 0.0
        %579 = vmatpush1.msra.mxu0 0.0
        %580 = vmatprep.subr.mxu0 0.0
        %581 = vmatpush1.msra.mxu0 0.0
        %582 = vmatprep.mubr.f32.mxu0 0.0
        %583 = vmatmul.mubr.f32.gmra.mrb[0].mxu0 %v512
        %v584 = vpop.f32.mrb[0].mxu0
        %v585 = vadd.f32 %v508, %v584
        %v586 = vpop.f32.mrb[0].mxu0
        %587 = vdwg.mxu0
        %v588 = vxor.u32 %v585, 2147483648
        %v589 = vmul.f32 %v588, 1.442695
        %v590 = vpow.pop %v589
        %v591 = vadd.f32 %v590, 1.0
        %v592 = vrcp.pop %v591
        %v593 = vmul.f32 1.0, %v592
        %v594 = vlaneseq
        %v595 = vshrl.u32 %v594, 7
        %v596 = vsub.s32 0, %v595
        %v597 = vrot.slane %v593, %v596
        %599 = vbcast.lane.b32.xlu0 %v597, 256
        %v600 = vpop.permute.xlu0 %599
        %s602 = sor.u32 256, 8
        %603 = vbcast.lane.b32.xlu0 %v597, %s602
        %v604 = vpop.permute.xlu0 %603
        %s606 = sor.u32 256, 16
        %607 = vbcast.lane.b32.xlu0 %v597, %s606
        %v608 = vpop.permute.xlu0 %607
        %s610 = sor.u32 256, 24
        %611 = vbcast.lane.b32.xlu0 %v597, %s610
        %v612 = vpop.permute.xlu0 %611
        %v613 = vlaneseq
        %v614 = vshrl.u32 %v613, 7
        %v615 = vsub.s32 1, %v614
        %v616 = vrot.slane %v593, %v615
        %618 = vbcast.lane.b32.xlu0 %v616, 256
        %v619 = vpop.permute.xlu0 %618
        %s621 = sor.u32 256, 8
        %622 = vbcast.lane.b32.xlu0 %v616, %s621
        %v623 = vpop.permute.xlu0 %622
        %s625 = sor.u32 256, 16
        %626 = vbcast.lane.b32.xlu0 %v616, %s625
        %v627 = vpop.permute.xlu0 %626
        %s629 = sor.u32 256, 24
        %630 = vbcast.lane.b32.xlu0 %v616, %s629
        %v631 = vpop.permute.xlu0 %630
        %v632 = vlaneseq
        %v633 = vshrl.u32 %v632, 7
        %v634 = vsub.s32 2, %v633
        %v635 = vrot.slane %v593, %v634
        %637 = vbcast.lane.b32.xlu0 %v635, 256
        %v638 = vpop.permute.xlu0 %637
        %s640 = sor.u32 256, 8
        %641 = vbcast.lane.b32.xlu0 %v635, %s640
        %v642 = vpop.permute.xlu0 %641
        %s644 = sor.u32 256, 16
        %645 = vbcast.lane.b32.xlu0 %v635, %s644
        %v646 = vpop.permute.xlu0 %645
        %s648 = sor.u32 256, 24
        %649 = vbcast.lane.b32.xlu0 %v635, %s648
        %v650 = vpop.permute.xlu0 %649
        %v651 = vlaneseq
        %v652 = vshrl.u32 %v651, 7
        %v653 = vsub.s32 3, %v652
        %v654 = vrot.slane %v593, %v653
        %656 = vbcast.lane.b32.xlu0 %v654, 256
        %v657 = vpop.permute.xlu0 %656
        %s659 = sor.u32 256, 8
        %660 = vbcast.lane.b32.xlu0 %v654, %s659
        %v661 = vpop.permute.xlu0 %660
        %s663 = sor.u32 256, 16
        %664 = vbcast.lane.b32.xlu0 %v654, %s663
        %v665 = vpop.permute.xlu0 %664
        %s667 = sor.u32 256, 24
        %668 = vbcast.lane.b32.xlu0 %v654, %s667
        %v669 = vpop.permute.xlu0 %668
        %v670 = vmul.f32 %v246, %v600
        %v671 = vmul.f32 %v247, %v604
        %v672 = vmul.f32 %v248, %v608
        %v673 = vmul.f32 %v249, %v612
        %v674 = vmul.f32 %v250, %v619
        %v675 = vmul.f32 %v251, %v623
        %v676 = vmul.f32 %v252, %v627
        %v677 = vmul.f32 %v253, %v631
        %v678 = vmul.f32 %v254, %v638
        %v679 = vmul.f32 %v255, %v642
        %v680 = vmul.f32 %v256, %v646
        %v681 = vmul.f32 %v257, %v650
        %v682 = vmul.f32 %v258, %v657
        %v683 = vmul.f32 %v259, %v661
        %v684 = vmul.f32 %v260, %v665
        %v685 = vmul.f32 %v261, %v669
        %686 = vst [vmem:[%s243] sm:$0xff] %v670
        %687 = vst [vmem:[%s243 + $0x8] sm:$0xff] %v671
        %688 = vst [vmem:[%s243 + $0x10] sm:$0xff] %v672
        %689 = vst [vmem:[%s243 + $0x18] sm:$0xff] %v673
        %690 = vst [vmem:[%s243 + $0x20] sm:$0xff] %v674
        %691 = vst [vmem:[%s243 + $0x28] sm:$0xff] %v675
        %692 = vst [vmem:[%s243 + $0x30] sm:$0xff] %v676
        %693 = vst [vmem:[%s243 + $0x38] sm:$0xff] %v677
        %694 = vst [vmem:[%s243 + $0x40] sm:$0xff] %v678
        %695 = vst [vmem:[%s243 + $0x48] sm:$0xff] %v679
        %696 = vst [vmem:[%s243 + $0x50] sm:$0xff] %v680
        %697 = vst [vmem:[%s243 + $0x58] sm:$0xff] %v681
        %698 = vst [vmem:[%s243 + $0x60] sm:$0xff] %v682
        %699 = vst [vmem:[%s243 + $0x68] sm:$0xff] %v683
        %700 = vst [vmem:[%s243 + $0x70] sm:$0xff] %v684
        %701 = vst [vmem:[%s243 + $0x78] sm:$0xff] %v685
        %s702 = sand.u32 %s140, 1
        %s703 = scalar_lea.sflag [#allocation4], %s702
        %s704 = sand.u32 %s140, 1
        %s705 = smul.addr %s704, 128
        %s706 = scalar_lea.vmem [#allocation5], %s705
        // Predicated region
        $region45: #{tpu_custom_call.1} parent=39 // pred_check
          %p707 = pneg %p150
        $region46: #{tpu_custom_call.1} parent=39 // pred_check_branch
          %709 = sbr.rel (%p707) target = $region48
        $region47: #{tpu_custom_call.1} parent=39 // pred_region
          %s710 = smul.u32 4, %s22
          %s712 = ssub.s32 2048, 2048
          %713 = vsyncadd %s703, %s712
          %s714 = smul.addr %s710, 4
          %s715 = smul.addr %s714, 128
          %s716 = scalar_lea.hbm %s5, %s715
          %s717 = sshll.u32 %s706, 4
          %s718 = int_to_ptr.vmem [resolvable:$true] %s717
          %723 = dma.vmem_to_hbm [thread:$0]  %s718, 2048, %s716, %s703, 128, 128, 8
        $region48: #{tpu_custom_call.1} parent=39 // pred_fallthru
          _
      $region40: #{tpu_custom_call.1} parent=5 // pred_fallthru
        _
      %p724 = scmp.le.s32.totalorder 2, %s17
      // Predicated region
      $region49: #{tpu_custom_call.1} parent=5 // pred_check
        %p725 = pneg %p724
      $region50: #{tpu_custom_call.1} parent=5 // pred_check_branch
        %727 = sbr.rel (%p725) target = $region52
      $region51: #{tpu_custom_call.1} parent=5 // pred_region
        %s728 = ssub.s32 %s17, 2
        // Predicated region
        $region53: #{tpu_custom_call.1} parent=51 // pred_check
          %p729 = pneg %p156
        $region54: #{tpu_custom_call.1} parent=51 // pred_check_branch
          %731 = sbr.rel (%p729) target = $region56
        $region55: #{tpu_custom_call.1} parent=51 // pred_region
          %s732 = sand.u32 %s141, 1
          %s733 = scalar_lea.sflag [#allocation4], %s732
          %s734 = sand.u32 %s141, 1
          %s735 = smul.addr %s734, 128
          %s736 = scalar_lea.vmem [#allocation5], %s735
          %737 = dma.done %s733, 2048
        $region56: #{tpu_custom_call.1} parent=51 // pred_fallthru
          _
      $region52: #{tpu_custom_call.1} parent=5 // pred_fallthru
        _
    $region6: #{tpu_custom_call.1} parent=1 // loop_footer
      %s21 = sadd.s32 1, %s17
    $region7: #{tpu_custom_call.1} parent=1 // loop_footer_branch
      %16 = sbr.rel target = $region3
    $region8: #{tpu_custom_call.1} parent=1 // loop_exit
      _
    %738 = vsyncpa [#allocation3], 1
    %s739 = scalar_lea.sflag [#allocation3], 1
    %740 = vsyncpa %s739, 1
    %741 = vsyncpa [#allocation4], 1
    %s742 = scalar_lea.sflag [#allocation4], 1
    %743 = vsyncpa %s742, 1

</llo_original>
